<compile_context>
chip_gen: v7x
topology: tpu7x:2x2x1
jax: 0.10.0
libtpu: 0.0.40
codegen_flags: <defaults>
</compile_context>

<pallas_src>
import functools
import math

import jax
import jax.numpy as jnp
from jax.experimental import pallas as pl
from jax.experimental.pallas import tpu as pltpu


def _embedding_kernel(ids_ref, pos_ref, emb_hbm, out_ref, gather_buf, sems,
                      *, scale, seq_tile, batch):
    # ids_ref:    SMEM (S*B,) int32, flat row-major (n = s*B + b)   [scalar prefetch]
    # pos_ref:    VMEM (seq_tile, D) positional rows for this sequence tile
    # emb_hbm:    HBM  (V, D) full embedding table (memory_space=pl.ANY)
    # out_ref:    VMEM (seq_tile, B, D) output block
    # gather_buf: VMEM (seq_tile*B, D) staging buffer; row b*seq_tile + s holds token (s, b)
    # sems:       DMA semaphores, one per in-flight row copy
    seq_base = pl.program_id(0) * seq_tile

    # Issue one row-gather DMA per token of this (seq_tile, batch) block.
    # All copies proceed concurrently on the DMA engine while we issue the rest.
    @pl.loop(0, seq_tile)
    def _issue(s_local):
        for b in range(batch):  # static unroll over the (small, static) batch axis
            tok = ids_ref[(seq_base + s_local) * batch + b]
            dst = b * seq_tile + s_local
            pltpu.make_async_copy(emb_hbm.at[tok],
                                  gather_buf.at[dst],
                                  sems.at[dst]).start()

    # Wait for all row DMAs of this tile.
    @pl.loop(0, seq_tile)
    def _wait(s_local):
        for b in range(batch):
            dst = b * seq_tile + s_local
            pltpu.make_async_copy(emb_hbm.at[0],
                                  gather_buf.at[dst],
                                  sems.at[dst]).wait()

    # Scale and add positional rows (shared across the batch axis), one batch column
    # at a time: contiguous, statically-offset (seq_tile, D) slabs -> no reshape/relayout.
    pos = pos_ref[...]  # (seq_tile, D)
    for b in range(batch):  # static
        rows = gather_buf[pl.ds(b * seq_tile, seq_tile), :].astype(jnp.float32)
        out_ref[:, b, :] = (rows * jnp.float32(scale) + pos).astype(out_ref.dtype)


def make_positional_encoding(max_len: int, d_model: int) -> jnp.ndarray:
    """Same formula as the PyTorch PositionalEncoding buffer (plain-JAX glue)."""
    position = jnp.arange(max_len, dtype=jnp.float32)[:, None]            # (L, 1)
    div_term = jnp.exp(jnp.arange(0, d_model, 2, dtype=jnp.float32)
                       * -(math.log(10000.0) / d_model))                  # (D/2,)
    ang = position * div_term                                             # (L, D/2)
    enc = jnp.zeros((max_len, d_model), dtype=jnp.float32)
    enc = enc.at[:, 0::2].set(jnp.sin(ang))
    enc = enc.at[:, 1::2].set(jnp.cos(ang))
    return enc


def transformer_embedding(x, emb_table, encoding, *, seq_tile=8):
    """x: (S, B) int32 token ids in [0, V); emb_table: (V, D); encoding: (max_len, D)."""
    S, B = x.shape
    V, D = emb_table.shape
    max_len = encoding.shape[0]
    assert encoding.shape[1] == D
    assert S <= max_len
    # seq_tile must keep BlockSpec sublane dims aligned; for ragged S, pad the sequence.
    # TODO(synk): pad/mask a tail tile instead of requiring S % seq_tile == 0.
    assert seq_tile % 8 == 0 and S % seq_tile == 0, "seq_tile must be a multiple of 8 dividing S"
    # For real models D is a multiple of 128 (lane-dense output stores). Smaller D still
    # compiles (block last dim == full dim) but uses masked stores.

    ids_flat = x.reshape(-1).astype(jnp.int32)   # (S*B,), row-major: n = s*B + b

    kernel = functools.partial(_embedding_kernel,
                               scale=math.sqrt(D), seq_tile=seq_tile, batch=B)

    out = pl.pallas_call(
        kernel,
        out_shape=jax.ShapeDtypeStruct((S, B, D), jnp.float32),
        grid_spec=pltpu.PrefetchScalarGridSpec(
            num_scalar_prefetch=1,                      # ids -> SMEM
            grid=(S // seq_tile,),
            in_specs=[
                # positional rows, indexed by sequence tile only (broadcast over B in-kernel)
                pl.BlockSpec((seq_tile, D), lambda s, ids: (s, 0)),
                # embedding table stays in HBM; gathered row-by-row via manual DMA
                pl.BlockSpec(memory_space=pl.ANY),
            ],
            out_specs=pl.BlockSpec((seq_tile, B, D), lambda s, ids: (s, 0, 0)),
            scratch_shapes=[
                pltpu.VMEM((seq_tile * B, D), emb_table.dtype),
                pltpu.SemaphoreType.DMA((seq_tile * B,)),
            ],
        ),
        compiler_params=pltpu.CompilerParams(
            dimension_semantics=("parallel",)),
    )(ids_flat, encoding, emb_table)

    return out


def reference(x, emb_table, encoding):
    S, B = x.shape
    D = emb_table.shape[1]
    emb = emb_table[x] * math.sqrt(D)          # (S, B, D)
    return emb + encoding[:S][:, None, :]      # broadcast over batch (batch_first=False)


if __name__ == "__main__":
    d_model = 128          # lane-dense (multiple of 128)
    vocab_size = 256
    max_len = 32
    seq_len = 16
    batch = 2

    key = jax.random.PRNGKey(0)
    k_emb, k_ids = jax.random.split(key)

    # nn.Embedding default init is N(0, 1)
    emb_table = jax.random.normal(k_emb, (vocab_size, d_model), dtype=jnp.float32)
    encoding = make_positional_encoding(max_len, d_model)

    x = jax.random.randint(k_ids, (seq_len, batch), 0, vocab_size, dtype=jnp.int32)

    out = transformer_embedding(x, emb_table, encoding, seq_tile=8)
    out = jax.block_until_ready(out)

    ref = reference(x, emb_table, encoding)
    assert out.shape == (seq_len, batch, d_model)
    assert jnp.allclose(out, ref, atol=1e-5, rtol=1e-5), "mismatch vs reference"

    print("KERNEL_OK")
</pallas_src>

<mosaic_0001>
module attributes {stable_mosaic.version = 11 : i64} {
  func.func @_embedding_kernel(%arg0: i32, %arg1: memref<32xi32, #tpu.memory_space<smem>>, %arg2: memref<8x128xf32, #tpu.memory_space<vmem>>, %arg3: memref<256x128xf32, #tpu.memory_space<any>>, %arg4: memref<8x2x128xf32, #tpu.memory_space<vmem>>, %arg5: memref<16x128xf32, #tpu.memory_space<vmem>>, %arg6: memref<16x!tpu.dma_semaphore, #tpu.memory_space<semaphore_mem>>) attributes {dimension_semantics = [#tpu.dimension_semantics<parallel>], iteration_bounds = array<i64: 2>, scalar_prefetch = 1 : i64, scratch_operands = 2 : i64, tpu.core_type = #tpu.core_type<tc>, window_params = [{transform_indices = @transform_0, window_bounds = array<i64: 8, 128>}, {}, {transform_indices = @transform_2, window_bounds = array<i64: 8, 2, 128>}]} {
    %c8_i32 = arith.constant 8 : i32
    %0 = arith.muli %arg0, %c8_i32 : i32
    %c0_i32 = arith.constant 0 : i32
    %c8_i32_0 = arith.constant 8 : i32
    %1 = arith.addi %c0_i32, %c8_i32_0 : i32
    %c1_i32 = arith.constant 1 : i32
    scf.for %arg7 = %c0_i32 to %1 step %c1_i32  : i32 {
      %c1_i32_16 = arith.constant 1 : i32
      %18 = arith.muli %arg7, %c1_i32_16 : i32
      %c0_i32_17 = arith.constant 0 : i32
      %19 = arith.addi %c0_i32_17, %18 : i32
      %20 = arith.addi %0, %19 : i32
      %c2_i32 = arith.constant 2 : i32
      %21 = arith.muli %20, %c2_i32 : i32
      %c0_i32_18 = arith.constant 0 : i32
      %22 = arith.addi %21, %c0_i32_18 : i32
      %23 = arith.index_cast %22 : i32 to index
      %24 = memref.load %arg1[%23] : memref<32xi32, #tpu.memory_space<smem>>
      %c0_i32_19 = arith.constant 0 : i32
      %25 = arith.addi %c0_i32_19, %19 : i32
      %c0_i32_20 = arith.constant 0 : i32
      %26 = tpu.memref_slice %arg3[%24, %c0_i32_20] : memref<256x128xf32, #tpu.memory_space<any>> -> memref<1x128xf32, #tpu.memory_space<any>>
      %27 = tpu.memref_squeeze %26 : memref<1x128xf32, #tpu.memory_space<any>> -> memref<128xf32, #tpu.memory_space<any>>
      %c0_i32_21 = arith.constant 0 : i32
      %28 = tpu.memref_slice %arg5[%25, %c0_i32_21] : memref<16x128xf32, #tpu.memory_space<vmem>> -> memref<1x128xf32, #tpu.memory_space<vmem>>
      %29 = tpu.memref_squeeze %28 : memref<1x128xf32, #tpu.memory_space<vmem>> -> memref<128xf32, #tpu.memory_space<vmem>>
      %30 = tpu.memref_slice %arg6[%25] : memref<16x!tpu.dma_semaphore, #tpu.memory_space<semaphore_mem>> -> memref<1x!tpu.dma_semaphore, #tpu.memory_space<semaphore_mem>>
      %31 = tpu.memref_squeeze %30 : memref<1x!tpu.dma_semaphore, #tpu.memory_space<semaphore_mem>> -> memref<!tpu.dma_semaphore, #tpu.memory_space<semaphore_mem>>
      tpu.enqueue_dma source(%27 : memref<128xf32, #tpu.memory_space<any>>) target(%29 : memref<128xf32, #tpu.memory_space<vmem>>) target_semaphore(%31 : memref<!tpu.dma_semaphore, #tpu.memory_space<semaphore_mem>>)
      %32 = arith.addi %0, %19 : i32
      %c2_i32_22 = arith.constant 2 : i32
      %33 = arith.muli %32, %c2_i32_22 : i32
      %c1_i32_23 = arith.constant 1 : i32
      %34 = arith.addi %33, %c1_i32_23 : i32
      %35 = arith.index_cast %34 : i32 to index
      %36 = memref.load %arg1[%35] : memref<32xi32, #tpu.memory_space<smem>>
      %c8_i32_24 = arith.constant 8 : i32
      %37 = arith.addi %c8_i32_24, %19 : i32
      %c0_i32_25 = arith.constant 0 : i32
      %38 = tpu.memref_slice %arg3[%36, %c0_i32_25] : memref<256x128xf32, #tpu.memory_space<any>> -> memref<1x128xf32, #tpu.memory_space<any>>
      %39 = tpu.memref_squeeze %38 : memref<1x128xf32, #tpu.memory_space<any>> -> memref<128xf32, #tpu.memory_space<any>>
      %c0_i32_26 = arith.constant 0 : i32
      %40 = tpu.memref_slice %arg5[%37, %c0_i32_26] : memref<16x128xf32, #tpu.memory_space<vmem>> -> memref<1x128xf32, #tpu.memory_space<vmem>>
      %41 = tpu.memref_squeeze %40 : memref<1x128xf32, #tpu.memory_space<vmem>> -> memref<128xf32, #tpu.memory_space<vmem>>
      %42 = tpu.memref_slice %arg6[%37] : memref<16x!tpu.dma_semaphore, #tpu.memory_space<semaphore_mem>> -> memref<1x!tpu.dma_semaphore, #tpu.memory_space<semaphore_mem>>
      %43 = tpu.memref_squeeze %42 : memref<1x!tpu.dma_semaphore, #tpu.memory_space<semaphore_mem>> -> memref<!tpu.dma_semaphore, #tpu.memory_space<semaphore_mem>>
      tpu.enqueue_dma source(%39 : memref<128xf32, #tpu.memory_space<any>>) target(%41 : memref<128xf32, #tpu.memory_space<vmem>>) target_semaphore(%43 : memref<!tpu.dma_semaphore, #tpu.memory_space<semaphore_mem>>)
    }
    %c8_i32_1 = arith.constant 8 : i32
    %c0_i32_2 = arith.constant 0 : i32
    %c8_i32_3 = arith.constant 8 : i32
    %2 = arith.addi %c0_i32_2, %c8_i32_3 : i32
    %c1_i32_4 = arith.constant 1 : i32
    scf.for %arg7 = %c0_i32_2 to %2 step %c1_i32_4  : i32 {
      %c1_i32_16 = arith.constant 1 : i32
      %18 = arith.muli %arg7, %c1_i32_16 : i32
      %c0_i32_17 = arith.constant 0 : i32
      %19 = arith.addi %c0_i32_17, %18 : i32
      %c0_i32_18 = arith.constant 0 : i32
      %20 = arith.addi %c0_i32_18, %19 : i32
      %c0_i32_19 = arith.constant 0 : i32
      %c0_i32_20 = arith.constant 0 : i32
      %21 = tpu.memref_slice %arg3[%c0_i32_19, %c0_i32_20] : memref<256x128xf32, #tpu.memory_space<any>> -> memref<1x128xf32, #tpu.memory_space<any>>
      %22 = tpu.memref_squeeze %21 : memref<1x128xf32, #tpu.memory_space<any>> -> memref<128xf32, #tpu.memory_space<any>>
      %c0_i32_21 = arith.constant 0 : i32
      %23 = tpu.memref_slice %arg5[%20, %c0_i32_21] : memref<16x128xf32, #tpu.memory_space<vmem>> -> memref<1x128xf32, #tpu.memory_space<vmem>>
      %24 = tpu.memref_squeeze %23 : memref<1x128xf32, #tpu.memory_space<vmem>> -> memref<128xf32, #tpu.memory_space<vmem>>
      %25 = tpu.memref_slice %arg6[%20] : memref<16x!tpu.dma_semaphore, #tpu.memory_space<semaphore_mem>> -> memref<1x!tpu.dma_semaphore, #tpu.memory_space<semaphore_mem>>
      %26 = tpu.memref_squeeze %25 : memref<1x!tpu.dma_semaphore, #tpu.memory_space<semaphore_mem>> -> memref<!tpu.dma_semaphore, #tpu.memory_space<semaphore_mem>>
      tpu.wait_dma2 semaphore(%26 : memref<!tpu.dma_semaphore, #tpu.memory_space<semaphore_mem>>) src(%22 : memref<128xf32, #tpu.memory_space<any>>) dst(%24 : memref<128xf32, #tpu.memory_space<vmem>>)
      %c8_i32_22 = arith.constant 8 : i32
      %27 = arith.addi %c8_i32_22, %19 : i32
      %c0_i32_23 = arith.constant 0 : i32
      %c0_i32_24 = arith.constant 0 : i32
      %28 = tpu.memref_slice %arg3[%c0_i32_23, %c0_i32_24] : memref<256x128xf32, #tpu.memory_space<any>> -> memref<1x128xf32, #tpu.memory_space<any>>
      %29 = tpu.memref_squeeze %28 : memref<1x128xf32, #tpu.memory_space<any>> -> memref<128xf32, #tpu.memory_space<any>>
      %c0_i32_25 = arith.constant 0 : i32
      %30 = tpu.memref_slice %arg5[%27, %c0_i32_25] : memref<16x128xf32, #tpu.memory_space<vmem>> -> memref<1x128xf32, #tpu.memory_space<vmem>>
      %31 = tpu.memref_squeeze %30 : memref<1x128xf32, #tpu.memory_space<vmem>> -> memref<128xf32, #tpu.memory_space<vmem>>
      %32 = tpu.memref_slice %arg6[%27] : memref<16x!tpu.dma_semaphore, #tpu.memory_space<semaphore_mem>> -> memref<1x!tpu.dma_semaphore, #tpu.memory_space<semaphore_mem>>
      %33 = tpu.memref_squeeze %32 : memref<1x!tpu.dma_semaphore, #tpu.memory_space<semaphore_mem>> -> memref<!tpu.dma_semaphore, #tpu.memory_space<semaphore_mem>>
      tpu.wait_dma2 semaphore(%33 : memref<!tpu.dma_semaphore, #tpu.memory_space<semaphore_mem>>) src(%29 : memref<128xf32, #tpu.memory_space<any>>) dst(%31 : memref<128xf32, #tpu.memory_space<vmem>>)
    }
    %c8_i32_5 = arith.constant 8 : i32
    %c0 = arith.constant 0 : index
    %c0_6 = arith.constant 0 : index
    %3 = vector.load %arg2[%c0, %c0_6] : memref<8x128xf32, #tpu.memory_space<vmem>>, vector<8x128xf32>
    %c0_7 = arith.constant 0 : index
    %c0_8 = arith.constant 0 : index
    %4 = vector.load %arg5[%c0_7, %c0_8] : memref<16x128xf32, #tpu.memory_space<vmem>>, vector<8x128xf32>
    %cst = arith.constant 11.3137083 : f32
    %5 = vector.broadcast %cst : f32 to vector<8x128xf32>
    %6 = arith.mulf %4, %5 : vector<8x128xf32>
    %7 = arith.addf %6, %3 : vector<8x128xf32>
    %c0_9 = arith.constant 0 : index
    %c0_10 = arith.constant 0 : index
    %c0_11 = arith.constant 0 : index
    %8 = vector.load %arg4[%c0_9, %c0_10, %c0_11] : memref<8x2x128xf32, #tpu.memory_space<vmem>>, vector<8x1x128xf32>
    %9 = vector.shape_cast %8 : vector<8x1x128xf32> to vector<8x128xf32>
    %10 = vector.shape_cast %7 : vector<8x128xf32> to vector<8x1x128xf32>
    tpu.vector_store %arg4[%c0_9, %c0_10, %c0_11], %10 {strides = array<i32>} : memref<8x2x128xf32, #tpu.memory_space<vmem>>, vector<8x1x128xf32>,
    %c8 = arith.constant 8 : index
    %c0_12 = arith.constant 0 : index
    %11 = vector.load %arg5[%c8, %c0_12] : memref<16x128xf32, #tpu.memory_space<vmem>>, vector<8x128xf32>
    %cst_13 = arith.constant 11.3137083 : f32
    %12 = vector.broadcast %cst_13 : f32 to vector<8x128xf32>
    %13 = arith.mulf %11, %12 : vector<8x128xf32>
    %14 = arith.addf %13, %3 : vector<8x128xf32>
    %c0_14 = arith.constant 0 : index
    %c1 = arith.constant 1 : index
    %c0_15 = arith.constant 0 : index
    %15 = vector.load %arg4[%c0_14, %c1, %c0_15] : memref<8x2x128xf32, #tpu.memory_space<vmem>>, vector<8x1x128xf32>
    %16 = vector.shape_cast %15 : vector<8x1x128xf32> to vector<8x128xf32>
    %17 = vector.shape_cast %14 : vector<8x128xf32> to vector<8x1x128xf32>
    tpu.vector_store %arg4[%c0_14, %c1, %c0_15], %17 {strides = array<i32>} : memref<8x2x128xf32, #tpu.memory_space<vmem>>, vector<8x1x128xf32>,
    return
  }
  func.func @transform_0(%arg0: i32, %arg1: memref<32xi32, #tpu.memory_space<smem>>) -> (i32, i32) {
    %c0_i32 = arith.constant 0 : i32
    %c0_i32_0 = arith.constant 0 : i32
    return %arg0, %c0_i32 : i32, i32
  }
  func.func @transform_2(%arg0: i32, %arg1: memref<32xi32, #tpu.memory_space<smem>>) -> (i32, i32, i32) {
    %c0_i32 = arith.constant 0 : i32
    %c0_i32_0 = arith.constant 0 : i32
    %c0_i32_1 = arith.constant 0 : i32
    return %arg0, %c0_i32, %c0_i32_0 : i32, i32, i32
  }
}

</mosaic_0001>

<llo_original>
// kernel: tpu_custom_call.1
$region0: #{tpu_custom_call.1}
  #allocation0 [shape = 'u32[]', space=smem, size = 0x4, offset = 0x4, fixed_abs, tag = 'smem constant byte address 0x4 - core index']
  #allocation1 [shape = 'u32[144,128]{1,0:T(1,128)}', space=vmem, size = 0x12000, scoped, tag = 'internal scratch']
  #allocation2 [shape = 'f32[16,128]{1,0:T(8,128)}', space=vmem, size = 0x2000, scoped, tag = 'scratch operand']
  #allocation3 [shape = 's32[16]{0}', space=sflag, size = 0x40, scoped, tag = 'scratch operand']
  #allocation4 [shape = 's32[1]{0}', space=sflag, size = 0x4, scoped, tag = 'scoped memory for tpu_custom_call.1']
  #allocation5 [shape = 'u8[512]{0}', space=smem, size = 0x200, scoped, tag = 'prefetched SMEM operand 0']
  #allocation10 [shape = 's32[]', space=sflag, size = 0x4, offset = 0, fixed_abs, tag = 'sflag constant byte address 0x0 - dummy sync flag']
  #allocation11 [shape = 's32[]', space=sflag, size = 0x4, offset = 0, fixed_abs, tag = 'sflag constant byte address 0x0 - dummy sync flag']
  #allocation12 [shape = 'u32[]', space=smem, size = 0x4, offset = 0x44, fixed_abs, tag = 'smem constant byte address 0x44 - assertion arg 0']
  #allocation13 [shape = 'u32[]', space=smem, size = 0x4, offset = 0x48, fixed_abs, tag = 'smem constant byte address 0x48 - assertion arg 1']
  #allocation14 [shape = 's32[]', space=sflag, size = 0x4, offset = 0, fixed_abs, tag = 'sflag constant byte address 0x0 - dummy sync flag']
  #allocation15 [shape = 's32[]', space=sflag, size = 0x4, offset = 0, fixed_abs, tag = 'sflag constant byte address 0x0 - dummy sync flag']
  %s0 = inlined_call_operand.hbm [shape: s32[32], index: 0, kind: input, shape index: {}]
  %s1 = inlined_call_operand.hbm [shape: f32[32,128], index: 1, kind: input, shape index: {}]
  %s2 = inlined_call_operand.hbm [shape: f32[256,128], index: 2, kind: input, shape index: {}]
  %s3 = inlined_call_operand.hbm [shape: f32[16,2,128], index: 3, kind: output, shape index: {}]
  %s4 = sld [smem:[#allocation0]]
  $region63: #{tpu_custom_call.1} parent=0
    _
  %s6 = ssub.s32 1, %s4
  %s7 = scalar_select 0, %s6, %s4
  %9 = dma.hbm_to_smem %s0, 16, [#allocation5], [#allocation4]
  %10 = dma.done [#allocation4], 16
  %11 = sfence
  $region1: #{tpu_custom_call.1} parent=0
    #allocation6 [shape = 'u8[8192]{0}', space=vmem, size = 0x2000, scoped, tag = 'input window, operand 1']
    #allocation7 [shape = 's32[2]{0}', space=sflag, size = 0x8, scoped, tag = 'scoped memory for tpu_custom_call.1']
    #allocation8 [shape = 's32[2]{0}', space=sflag, size = 0x8, scoped, tag = 'scoped memory for tpu_custom_call.1']
    #allocation9 [shape = 'u8[16384]{0}', space=vmem, size = 0x4000, scoped, tag = 'output window, operand 0']
    %12 = vsyncpa [#allocation7], 0
    %s13 = scalar_lea.sflag [#allocation7], 1
    %14 = vsyncpa %s13, 0
    %15 = vsyncpa [#allocation8], 0
    %s16 = scalar_lea.sflag [#allocation8], 1
    %17 = vsyncpa %s16, 0
    loop: start=0, step=1, limit=4
    $region2: #{tpu_custom_call.1} parent=1 // loop_pre_header
      _
    $region3: #{tpu_custom_call.1} parent=1 // loop_header
      %s19 = sphi 0, %s23
      %p20 = scmp.ge.s32.totalorder %s19, 4
      %s29 = sphi 0, %s31
      %s32 = sphi 0, %s29
      %s33 = sphi 0, %s32
      %s49 = sphi 0, %s33
      %s55 = sphi 0, %s57
      %s58 = sphi 0, %s55
      %s59 = sphi 0, %s58
      %s75 = sphi 0, %s59
    $region4: #{tpu_custom_call.1} parent=1 // loop_header_branch
      %22 = sbr.rel (%p20) target = $region8
    $region5: #{tpu_custom_call.1} parent=1 // loop_body
      %s24 = ssub.s32 %s19, 1
      %s25 = ssub.s32 %s19, 2
      %s26 = sadd.s32 %s19, 1
      %s27 = ssub.s32 %s19, %s26
      %p28 = scmp.eq.s32.totalorder %s27, 0
      %s30 = sadd.s32 %s29, 1
      %s31 = scalar_select %p28, %s29, %s30
      %p34 = pneg %p28
      %p35 = scmp.eq.s32.totalorder %s19, 1
      %p36 = por %p34, %p35
      %p37 = scmp.ne.s32.totalorder %s29, %s32
      %p38 = scmp.eq.s32.totalorder %s19, 0
      %p39 = por %p37, %p38
      %p40 = scmp.ne.s32.totalorder %s29, %s32
      %p41 = scmp.eq.s32.totalorder %s24, 1
      %p42 = por %p40, %p41
      %p43 = scmp.ne.s32.totalorder %s32, %s33
      %p44 = scmp.eq.s32.totalorder %s24, 0
      %p45 = por %p43, %p44
      %p46 = scmp.ne.s32.totalorder %s32, %s33
      %p47 = scmp.eq.s32.totalorder %s25, 1
      %p48 = por %p46, %p47
      %p50 = scmp.ne.s32.totalorder %s33, %s49
      %p51 = scmp.eq.s32.totalorder %s25, 0
      %p52 = por %p50, %p51
      %s53 = ssub.s32 %s19, %s26
      %p54 = scmp.eq.s32.totalorder %s53, 0
      %s56 = sadd.s32 %s55, 1
      %s57 = scalar_select %p54, %s55, %s56
      %p60 = pneg %p54
      %p61 = scmp.eq.s32.totalorder %s19, 1
      %p62 = por %p60, %p61
      %p63 = scmp.ne.s32.totalorder %s55, %s58
      %p64 = scmp.eq.s32.totalorder %s19, 0
      %p65 = por %p63, %p64
      %p66 = scmp.ne.s32.totalorder %s55, %s58
      %p67 = scmp.eq.s32.totalorder %s24, 1
      %p68 = por %p66, %p67
      %p69 = scmp.ne.s32.totalorder %s58, %s59
      %p70 = scmp.eq.s32.totalorder %s24, 0
      %p71 = por %p69, %p70
      %p72 = scmp.ne.s32.totalorder %s58, %s59
      %p73 = scmp.eq.s32.totalorder %s25, 1
      %p74 = por %p72, %p73
      %p76 = scmp.ne.s32.totalorder %s59, %s75
      %p77 = scmp.eq.s32.totalorder %s25, 0
      %p78 = por %p76, %p77
      %p79 = scmp.le.s32.totalorder 1, %s19
      %p80 = scmp.lt.s32.totalorder %s19, 3
      %p81 = pnand %p79, %p80
      %p82 = pneg %p81
      // Predicated region
      $region9: #{tpu_custom_call.1} parent=5 // pred_check
        _
      $region10: #{tpu_custom_call.1} parent=5 // pred_check_branch
        %84 = sbr.rel (%p81) target = $region12
      $region11: #{tpu_custom_call.1} parent=5 // pred_region
        %s85 = ssub.s32 %s19, 1
      $region12: #{tpu_custom_call.1} parent=5 // pred_fallthru
        _
      %p86 = scmp.lt.s32.totalorder %s19, 2
      // Predicated region
      $region13: #{tpu_custom_call.1} parent=5 // pred_check
        %p87 = pneg %p86
      $region14: #{tpu_custom_call.1} parent=5 // pred_check_branch
        %89 = sbr.rel (%p87) target = $region16
      $region15: #{tpu_custom_call.1} parent=5 // pred_region
        // Predicated region
        $region17: #{tpu_custom_call.1} parent=15 // pred_check
          %p90 = pneg %p39
        $region18: #{tpu_custom_call.1} parent=15 // pred_check_branch
          %92 = sbr.rel (%p90) target = $region20
        $region19: #{tpu_custom_call.1} parent=15 // pred_region
          %s93 = sand.u32 %s29, 1
          %s94 = scalar_lea.sflag [#allocation7], %s93
          %s95 = sand.u32 %s29, 1
          %s96 = smul.addr %s95, 8
          %s97 = scalar_lea.vmem [#allocation6], %s96
          %s99 = ssub.s32 128, 128
          %100 = vsyncadd %s94, %s99
          %s101 = smul.addr %s19, 128
          %s102 = scalar_lea.hbm %s1, %s101
          %s104 = sshll.u32 %s97, 4
          %s105 = int_to_ptr.vmem [resolvable:$true] %s104
          %107 = dma.hbm_to_vmem [thread:$0]  %s102, 128, %s105, %s94
        $region20: #{tpu_custom_call.1} parent=15 // pred_fallthru
          _
      $region16: #{tpu_custom_call.1} parent=5 // pred_fallthru
        _
      %p108 = scmp.le.s32.totalorder 1, %s19
      %p109 = scmp.lt.s32.totalorder %s19, 3
      %p110 = pnand %p108, %p109
      %p111 = pneg %p110
      // Predicated region
      $region21: #{tpu_custom_call.1} parent=5 // pred_check
        _
      $region22: #{tpu_custom_call.1} parent=5 // pred_check_branch
        %113 = sbr.rel (%p110) target = $region24
      $region23: #{tpu_custom_call.1} parent=5 // pred_region
        %s114 = ssub.s32 %s19, 1
        %s115 = sand.u32 %s32, 1
        %s116 = scalar_lea.sflag [#allocation7], %s115
        %s117 = sand.u32 %s32, 1
        %s118 = smul.addr %s117, 8
        %s119 = scalar_lea.vmem [#allocation6], %s118
        // Predicated region
        $region25: #{tpu_custom_call.1} parent=23 // pred_check
          %p120 = pneg %p45
        $region26: #{tpu_custom_call.1} parent=23 // pred_check_branch
          %122 = sbr.rel (%p120) target = $region28
        $region27: #{tpu_custom_call.1} parent=23 // pred_region
          %123 = dma.done %s116, 128
        $region28: #{tpu_custom_call.1} parent=23 // pred_fallthru
          _
        %s124 = sand.u32 %s32, 1
        %s125 = scalar_lea.sflag [#allocation7], %s124
        %s126 = sand.u32 %s32, 1
        %s127 = smul.addr %s126, 8
        %s128 = scalar_lea.vmem [#allocation6], %s127
        %p129 = pneg %p45
        %p130 = pneg %p42
        %p131 = pneg %p71
        %p132 = pneg %p68
        %s133 = sand.u32 %s58, 1
        %s134 = scalar_lea.sflag [#allocation8], %s133
        %s135 = sand.u32 %s58, 1
        %s136 = smul.addr %s135, 16
        %s137 = scalar_lea.vmem [#allocation9], %s136
        %s138 = smul.u32 8, %s24
        %s139 = smul.u32 %s24, 8
        loop: start=0, step=1, limit=8
        $region29: #{tpu_custom_call.1} parent=23 // loop_pre_header
          _
        $region30: #{tpu_custom_call.1} parent=23 // loop_header
          %s141 = sphi 0, %s145
          %p142 = scmp.ge.s32.totalorder %s141, 8
        $region31: #{tpu_custom_call.1} parent=23 // loop_header_branch
          %144 = sbr.rel (%p142) target = $region35
        $region32: #{tpu_custom_call.1} parent=23 // loop_body
          %s146 = sadd.s32 %s139, %s141
          %s147 = smul.u32 %s146, 2
          %s148 = sld [smem:[#allocation5 + %s147]]
          %s149 = smul.addr %s148, 16
          %s150 = scalar_lea.hbm %s2, %s149
          %s151 = scalar_lea.vmem [#allocation2], %s141
          %s152 = scalar_lea.sflag [#allocation3], %s141
          // Predicated region
          $region36: #{tpu_custom_call.1} parent=32 // pred_check
            _
          $region37: #{tpu_custom_call.1} parent=32 // pred_check_branch
            %154 = sbr.rel target = $region39
          $region38: #{tpu_custom_call.1} parent=32 // pred_region
            %155 = sst [smem:[#allocation12]] [#allocation11]
            %156 = sst [smem:[#allocation13]] [#allocation10]
          $region39: #{tpu_custom_call.1} parent=32 // pred_fallthru
            _
          %158 = shalt.err (0)
          %s160 = sshll.u32 %s151, 4
          %s161 = int_to_ptr.vmem [resolvable:$true] %s160
          %163 = dma.hbm_to_vmem [thread:$0]  %s150, 16, %s161, %s152
          %s164 = sadd.s32 %s147, 1
          %s165 = sld [smem:[#allocation5 + %s164]]
          %s166 = sadd.s32 %s141, 8
          %s167 = smul.addr %s165, 16
          %s168 = scalar_lea.hbm %s2, %s167
          %s169 = scalar_lea.vmem [#allocation2], %s166
          %s170 = scalar_lea.sflag [#allocation3], %s166
          // Predicated region
          $region40: #{tpu_custom_call.1} parent=32 // pred_check
            _
          $region41: #{tpu_custom_call.1} parent=32 // pred_check_branch
            %172 = sbr.rel target = $region43
          $region42: #{tpu_custom_call.1} parent=32 // pred_region
            %173 = sst [smem:[#allocation12]] [#allocation15]
            %174 = sst [smem:[#allocation13]] [#allocation14]
          $region43: #{tpu_custom_call.1} parent=32 // pred_fallthru
            _
          %176 = shalt.err (0)
          %s178 = sshll.u32 %s169, 4
          %s179 = int_to_ptr.vmem [resolvable:$true] %s178
          %181 = dma.hbm_to_vmem [thread:$0]  %s168, 16, %s179, %s170
        $region33: #{tpu_custom_call.1} parent=23 // loop_footer
          %s145 = sadd.s32 1, %s141
        $region34: #{tpu_custom_call.1} parent=23 // loop_footer_branch
          %140 = sbr.rel target = $region30
        $region35: #{tpu_custom_call.1} parent=23 // loop_exit
          _
        loop: start=0, step=1, limit=8
        $region44: #{tpu_custom_call.1} parent=23 // loop_pre_header
          _
        $region45: #{tpu_custom_call.1} parent=23 // loop_header
          %s183 = sphi 0, %s187
          %p184 = scmp.ge.s32.totalorder %s183, 8
        $region46: #{tpu_custom_call.1} parent=23 // loop_header_branch
          %186 = sbr.rel (%p184) target = $region50
        $region47: #{tpu_custom_call.1} parent=23 // loop_body
          %s188 = scalar_lea.sflag [#allocation3], %s183
          %190 = dma.done %s188, 16
          %s191 = sadd.s32 %s183, 8
          %s192 = scalar_lea.sflag [#allocation3], %s191
          %194 = dma.done %s192, 16
        $region48: #{tpu_custom_call.1} parent=23 // loop_footer
          %s187 = sadd.s32 1, %s183
        $region49: #{tpu_custom_call.1} parent=23 // loop_footer_branch
          %182 = sbr.rel target = $region45
        $region50: #{tpu_custom_call.1} parent=23 // loop_exit
          _
        %v195 = vld [vmem:[%s119] sm:$0xff]
        %v196 = vld [vmem:[#allocation2] sm:$0xff]
        %v197 = vmul.f32 %v196, 11.313708
        %v198 = vadd.f32 %v197, %v195
        %v200 = vcombine.high %v198, %v198
        %v202 = vunpack.c.l.s4 1966171168
        %v203 = vunpack.c.0.s8 %v202
        %v204 = vlaneseq
        %v205 = vshrl.u32 %v204, 7
        %v206 = vsub.s32 %v203, %v205
        %v207 = vrot.slane %v198, %v206
        %v209 = vunpack.c.l.s4 1966171168
        %v210 = vunpack.c.0.s8 %v209
        %v211 = vlaneseq
        %v212 = vshrl.u32 %v211, 7
        %v213 = vsub.s32 %v210, %v212
        %v214 = vrot.slane %v200, %v213
        %v215 = vcombine.high %v207, %v207
        %v216 = vcombine.high %v214, %v214
        %v218 = vunpack.c.l.s4 1966171168
        %v219 = vunpack.c.0.s8 %v218
        %v220 = vlaneseq
        %v221 = vshrl.u32 %v220, 7
        %v222 = vsub.s32 %v219, %v221
        %v223 = vrot.slane %v207, %v222
        %v225 = vunpack.c.l.s4 1966171168
        %v226 = vunpack.c.0.s8 %v225
        %v227 = vlaneseq
        %v228 = vshrl.u32 %v227, 7
        %v229 = vsub.s32 %v226, %v228
        %v230 = vrot.slane %v214, %v229
        %v232 = vunpack.c.l.s4 1966171168
        %v233 = vunpack.c.0.s8 %v232
        %v234 = vlaneseq
        %v235 = vshrl.u32 %v234, 7
        %v236 = vsub.s32 %v233, %v235
        %v237 = vrot.slane %v215, %v236
        %v239 = vunpack.c.l.s4 1966171168
        %v240 = vunpack.c.0.s8 %v239
        %v241 = vlaneseq
        %v242 = vshrl.u32 %v241, 7
        %v243 = vsub.s32 %v240, %v242
        %v244 = vrot.slane %v216, %v243
        %v245 = vcombine.high %v223, %v223
        %v246 = vcombine.high %v230, %v230
        %v247 = vcombine.high %v237, %v237
        %v248 = vcombine.high %v244, %v244
        %257 = vst [vmem:[%s137] sm:$0x1] %v223
        %258 = vst [vmem:[%s137 + $0x2] sm:$0x1] %v237
        %259 = vst [vmem:[%s137 + $0x4] sm:$0x1] %v245
        %260 = vst [vmem:[%s137 + $0x6] sm:$0x1] %v247
        %261 = vst [vmem:[%s137 + $0x8] sm:$0x1] %v230
        %262 = vst [vmem:[%s137 + $0xa] sm:$0x1] %v244
        %263 = vst [vmem:[%s137 + $0xc] sm:$0x1] %v246
        %264 = vst [vmem:[%s137 + $0xe] sm:$0x1] %v248
        %v265 = vld [vmem:[#allocation2 + $0x8] sm:$0xff]
        %v266 = vmul.f32 %v265, 11.313708
        %v267 = vadd.f32 %v266, %v195
        %v269 = vcombine.high %v267, %v267
        %v271 = vunpack.c.l.s4 1966171168
        %v272 = vunpack.c.0.s8 %v271
        %v273 = vlaneseq
        %v274 = vshrl.u32 %v273, 7
        %v275 = vsub.s32 %v272, %v274
        %v276 = vrot.slane %v267, %v275
        %v278 = vunpack.c.l.s4 1966171168
        %v279 = vunpack.c.0.s8 %v278
        %v280 = vlaneseq
        %v281 = vshrl.u32 %v280, 7
        %v282 = vsub.s32 %v279, %v281
        %v283 = vrot.slane %v269, %v282
        %v284 = vcombine.high %v276, %v276
        %v285 = vcombine.high %v283, %v283
        %v287 = vunpack.c.l.s4 1966171168
        %v288 = vunpack.c.0.s8 %v287
        %v289 = vlaneseq
        %v290 = vshrl.u32 %v289, 7
        %v291 = vsub.s32 %v288, %v290
        %v292 = vrot.slane %v276, %v291
        %v294 = vunpack.c.l.s4 1966171168
        %v295 = vunpack.c.0.s8 %v294
        %v296 = vlaneseq
        %v297 = vshrl.u32 %v296, 7
        %v298 = vsub.s32 %v295, %v297
        %v299 = vrot.slane %v283, %v298
        %v301 = vunpack.c.l.s4 1966171168
        %v302 = vunpack.c.0.s8 %v301
        %v303 = vlaneseq
        %v304 = vshrl.u32 %v303, 7
        %v305 = vsub.s32 %v302, %v304
        %v306 = vrot.slane %v284, %v305
        %v308 = vunpack.c.l.s4 1966171168
        %v309 = vunpack.c.0.s8 %v308
        %v310 = vlaneseq
        %v311 = vshrl.u32 %v310, 7
        %v312 = vsub.s32 %v309, %v311
        %v313 = vrot.slane %v285, %v312
        %v314 = vcombine.high %v292, %v292
        %v315 = vcombine.high %v299, %v299
        %v316 = vcombine.high %v306, %v306
        %v317 = vcombine.high %v313, %v313
        %326 = vst [vmem:[%s137 + $0x1] sm:$0x1] %v292
        %327 = vst [vmem:[%s137 + $0x3] sm:$0x1] %v306
        %328 = vst [vmem:[%s137 + $0x5] sm:$0x1] %v314
        %329 = vst [vmem:[%s137 + $0x7] sm:$0x1] %v316
        %330 = vst [vmem:[%s137 + $0x9] sm:$0x1] %v299
        %331 = vst [vmem:[%s137 + $0xb] sm:$0x1] %v313
        %332 = vst [vmem:[%s137 + $0xd] sm:$0x1] %v315
        %333 = vst [vmem:[%s137 + $0xf] sm:$0x1] %v317
        %s334 = sand.u32 %s58, 1
        %s335 = scalar_lea.sflag [#allocation8], %s334
        %s336 = sand.u32 %s58, 1
        %s337 = smul.addr %s336, 16
        %s338 = scalar_lea.vmem [#allocation9], %s337
        // Predicated region
        $region51: #{tpu_custom_call.1} parent=23 // pred_check
          %p339 = pneg %p68
        $region52: #{tpu_custom_call.1} parent=23 // pred_check_branch
          %341 = sbr.rel (%p339) target = $region54
        $region53: #{tpu_custom_call.1} parent=23 // pred_region
          %s342 = smul.u32 8, %s24
          %s344 = ssub.s32 256, 256
          %345 = vsyncadd %s335, %s344
          %s346 = smul.addr %s342, 32
          %s347 = scalar_lea.hbm %s3, %s346
          %s348 = sshll.u32 %s338, 4
          %s349 = int_to_ptr.vmem [resolvable:$true] %s348
          %354 = dma.vmem_to_hbm [thread:$0]  %s349, 256, %s347, %s335, 32, 32, 2
        $region54: #{tpu_custom_call.1} parent=23 // pred_fallthru
          _
      $region24: #{tpu_custom_call.1} parent=5 // pred_fallthru
        _
      %p355 = scmp.le.s32.totalorder 2, %s19
      // Predicated region
      $region55: #{tpu_custom_call.1} parent=5 // pred_check
        %p356 = pneg %p355
      $region56: #{tpu_custom_call.1} parent=5 // pred_check_branch
        %358 = sbr.rel (%p356) target = $region58
      $region57: #{tpu_custom_call.1} parent=5 // pred_region
        %s359 = ssub.s32 %s19, 2
        // Predicated region
        $region59: #{tpu_custom_call.1} parent=57 // pred_check
          %p360 = pneg %p74
        $region60: #{tpu_custom_call.1} parent=57 // pred_check_branch
          %362 = sbr.rel (%p360) target = $region62
        $region61: #{tpu_custom_call.1} parent=57 // pred_region
          %s363 = sand.u32 %s59, 1
          %s364 = scalar_lea.sflag [#allocation8], %s363
          %s365 = sand.u32 %s59, 1
          %s366 = smul.addr %s365, 16
          %s367 = scalar_lea.vmem [#allocation9], %s366
          %368 = dma.done %s364, 256
        $region62: #{tpu_custom_call.1} parent=57 // pred_fallthru
          _
      $region58: #{tpu_custom_call.1} parent=5 // pred_fallthru
        _
    $region6: #{tpu_custom_call.1} parent=1 // loop_footer
      %s23 = sadd.s32 1, %s19
    $region7: #{tpu_custom_call.1} parent=1 // loop_footer_branch
      %18 = sbr.rel target = $region3
    $region8: #{tpu_custom_call.1} parent=1 // loop_exit
      _
    %369 = vsyncpa [#allocation7], 1
    %s370 = scalar_lea.sflag [#allocation7], 1
    %371 = vsyncpa %s370, 1
    %372 = vsyncpa [#allocation8], 1
    %s373 = scalar_lea.sflag [#allocation8], 1
    %374 = vsyncpa %s373, 1
  %375 = vsyncmov [#allocation3]
  %s376 = vpop.sfrf %375
  %p377 = scmp.eq.s32.totalorder %s376, 0
  %p378 = pneg %p377
  %380 = shalt.err (%p378)
  %s381 = scalar_lea.sflag [#allocation3], 1
  %382 = vsyncmov %s381
  %s383 = vpop.sfrf %382
  %p384 = scmp.eq.s32.totalorder %s383, 0
  %p385 = pneg %p384
  %387 = shalt.err (%p385)
  %s388 = scalar_lea.sflag [#allocation3], 2
  %389 = vsyncmov %s388
  %s390 = vpop.sfrf %389
  %p391 = scmp.eq.s32.totalorder %s390, 0
  %p392 = pneg %p391
  %394 = shalt.err (%p392)
  %s395 = scalar_lea.sflag [#allocation3], 3
  %396 = vsyncmov %s395
  %s397 = vpop.sfrf %396
  %p398 = scmp.eq.s32.totalorder %s397, 0
  %p399 = pneg %p398
  %401 = shalt.err (%p399)
  %s402 = scalar_lea.sflag [#allocation3], 4
  %403 = vsyncmov %s402
  %s404 = vpop.sfrf %403
  %p405 = scmp.eq.s32.totalorder %s404, 0
  %p406 = pneg %p405
  %408 = shalt.err (%p406)
  %s409 = scalar_lea.sflag [#allocation3], 5
  %410 = vsyncmov %s409
  %s411 = vpop.sfrf %410
  %p412 = scmp.eq.s32.totalorder %s411, 0
  %p413 = pneg %p412
  %415 = shalt.err (%p413)
  %s416 = scalar_lea.sflag [#allocation3], 6
  %417 = vsyncmov %s416
  %s418 = vpop.sfrf %417
  %p419 = scmp.eq.s32.totalorder %s418, 0
  %p420 = pneg %p419
  %422 = shalt.err (%p420)
  %s423 = scalar_lea.sflag [#allocation3], 7
  %424 = vsyncmov %s423
  %s425 = vpop.sfrf %424
  %p426 = scmp.eq.s32.totalorder %s425, 0
  %p427 = pneg %p426
  %429 = shalt.err (%p427)
  %s430 = scalar_lea.sflag [#allocation3], 8
  %431 = vsyncmov %s430
  %s432 = vpop.sfrf %431
  %p433 = scmp.eq.s32.totalorder %s432, 0
  %p434 = pneg %p433
  %436 = shalt.err (%p434)
  %s437 = scalar_lea.sflag [#allocation3], 9
  %438 = vsyncmov %s437
  %s439 = vpop.sfrf %438
  %p440 = scmp.eq.s32.totalorder %s439, 0
  %p441 = pneg %p440
  %443 = shalt.err (%p441)
  %s444 = scalar_lea.sflag [#allocation3], 10
  %445 = vsyncmov %s444
  %s446 = vpop.sfrf %445
  %p447 = scmp.eq.s32.totalorder %s446, 0
  %p448 = pneg %p447
  %450 = shalt.err (%p448)
  %s451 = scalar_lea.sflag [#allocation3], 11
  %452 = vsyncmov %s451
  %s453 = vpop.sfrf %452
  %p454 = scmp.eq.s32.totalorder %s453, 0
  %p455 = pneg %p454
  %457 = shalt.err (%p455)
  %s458 = scalar_lea.sflag [#allocation3], 12
  %459 = vsyncmov %s458
  %s460 = vpop.sfrf %459
  %p461 = scmp.eq.s32.totalorder %s460, 0
  %p462 = pneg %p461
  %464 = shalt.err (%p462)
  %s465 = scalar_lea.sflag [#allocation3], 13
  %466 = vsyncmov %s465
  %s467 = vpop.sfrf %466
  %p468 = scmp.eq.s32.totalorder %s467, 0
  %p469 = pneg %p468
  %471 = shalt.err (%p469)
  %s472 = scalar_lea.sflag [#allocation3], 14
  %473 = vsyncmov %s472
  %s474 = vpop.sfrf %473
  %p475 = scmp.eq.s32.totalorder %s474, 0
  %p476 = pneg %p475
  %478 = shalt.err (%p476)
  %s479 = scalar_lea.sflag [#allocation3], 15
  %480 = vsyncmov %s479
  %s481 = vpop.sfrf %480
  %p482 = scmp.eq.s32.totalorder %s481, 0
  %p483 = pneg %p482
  %485 = shalt.err (%p483)

</llo_original>
